<compile_context>
chip_gen: v7x
topology: tpu7x:2x2x1
jax: 0.10.0
libtpu: 0.0.40
codegen_flags: <defaults>
</compile_context>

<pallas_src>
import math

import jax
import jax.numpy as jnp
from jax.experimental import pallas as pl
from jax.experimental.pallas import tpu as pltpu

IN_DIM = 784
HID1 = 128
HID2 = 64
OUT_DIM = 10
OUT_PAD = 128          # lane-dense padded logit width
NEG_BIG = -1e30        # pad-lane bias: exp underflows to exactly 0, max unaffected


def _round_up(n, m):
    return ((n + m - 1) // m) * m


# ----------------------------------------------------------------------------- kernel
def mlp_kernel(x_ref, w1_ref, b1_ref, w2_ref, b2_ref, w3_ref, b3_ref, out_ref):
    # x: (TB, 784) bf16; w1: (784,128) bf16; w2: (128,64) bf16; w3: (64,128) bf16 (padded)
    # biases are f32 rows; all accumulation / elementwise math in f32.
    x = x_ref[...]

    # fc1 + ReLU
    h1 = jnp.dot(x, w1_ref[...], preferred_element_type=jnp.float32) + b1_ref[...]
    h1 = jnp.maximum(h1, 0.0)

    # fc2 + ReLU
    h2 = jnp.dot(h1.astype(jnp.bfloat16), w2_ref[...],
                 preferred_element_type=jnp.float32) + b2_ref[...]
    h2 = jnp.maximum(h2, 0.0)

    # fc3 (padded to 128 lanes) + log_softmax(dim=1); pad lanes carry bias -1e30 so they
    # never win the max and contribute exp(.) == 0 to the sum.
    logits = jnp.dot(h2.astype(jnp.bfloat16), w3_ref[...],
                     preferred_element_type=jnp.float32) + b3_ref[...]
    m = jnp.max(logits, axis=-1, keepdims=True)
    shifted = logits - m
    lse = jnp.log(jnp.sum(jnp.exp(shifted), axis=-1, keepdims=True))
    out_ref[...] = shifted - lse


# ---------------------------------------------------------------------------- wrapper
def mlp_forward(x, params, *, tb_max=1024):
    """x: (B, ...) flattened to (B, 784).  Returns (B, 10) f32 log-probabilities."""
    w1, b1, w2, b2, w3, b3 = params
    B = x.shape[0]
    x2d = x.reshape(B, -1).astype(jnp.float32)
    assert x2d.shape[1] == IN_DIM, f"expected {IN_DIM} features, got {x2d.shape[1]}"

    # Batch tile: multiple of 16 (bf16 sublane packing), capped; pad B up to a multiple.
    TB = min(tb_max, _round_up(B, 16))
    Bp = _round_up(B, TB)
    if Bp != B:
        x2d = jnp.pad(x2d, ((0, Bp - B), (0, 0)))

    # bf16 MXU inputs; f32 biases.
    xb = x2d.astype(jnp.bfloat16)
    w1b = w1.astype(jnp.bfloat16)
    w2b = w2.astype(jnp.bfloat16)
    w3p = (jnp.zeros((HID2, OUT_PAD), jnp.float32)
           .at[:, :OUT_DIM].set(w3).astype(jnp.bfloat16))
    b1r = b1.reshape(1, -1).astype(jnp.float32)
    b2r = b2.reshape(1, -1).astype(jnp.float32)
    b3p = (jnp.full((1, OUT_PAD), NEG_BIG, jnp.float32)
           .at[0, :OUT_DIM].set(b3.astype(jnp.float32)))

    grid = (Bp // TB,)
    out = pl.pallas_call(
        mlp_kernel,
        out_shape=jax.ShapeDtypeStruct((Bp, OUT_PAD), jnp.float32),
        grid_spec=pltpu.PrefetchScalarGridSpec(
            num_scalar_prefetch=0,
            grid=grid,
            in_specs=[
                pl.BlockSpec((TB, IN_DIM), lambda i: (i, 0)),      # x tile (pipelined)
                pl.BlockSpec((IN_DIM, HID1), lambda i: (0, 0)),    # w1 (resident)
                pl.BlockSpec((1, HID1), lambda i: (0, 0)),         # b1
                pl.BlockSpec((HID1, HID2), lambda i: (0, 0)),      # w2
                pl.BlockSpec((1, HID2), lambda i: (0, 0)),         # b2
                pl.BlockSpec((HID2, OUT_PAD), lambda i: (0, 0)),   # w3 (padded)
                pl.BlockSpec((1, OUT_PAD), lambda i: (0, 0)),      # b3 (padded)
            ],
            out_specs=pl.BlockSpec((TB, OUT_PAD), lambda i: (i, 0)),
        ),
        compiler_params=pltpu.CompilerParams(
            dimension_semantics=("parallel",),
        ),
    )(xb, w1b, b1r, w2b, b2r, w3p, b3p)

    return out[:B, :OUT_DIM]


# ------------------------------------------------------------------------ param init
def init_params(key):
    """Deterministic init mimicking PyTorch nn.Linear defaults (U(-1/sqrt(fan_in), +))."""
    def linear(key, fan_in, fan_out):
        kw, kb = jax.random.split(key)
        bound = 1.0 / math.sqrt(fan_in)
        # stored as (in, out) = transpose of PyTorch's (out, in)
        w = jax.random.uniform(kw, (fan_in, fan_out), jnp.float32, -bound, bound)
        b = jax.random.uniform(kb, (fan_out,), jnp.float32, -bound, bound)
        return w, b

    k1, k2, k3 = jax.random.split(key, 3)
    w1, b1 = linear(k1, IN_DIM, HID1)
    w2, b2 = linear(k2, HID1, HID2)
    w3, b3 = linear(k3, HID2, OUT_DIM)
    return (w1, b1, w2, b2, w3, b3)


# ------------------------------------------------------------------------- references
def reference_forward(x, params, *, matmul_dtype=jnp.float32):
    """Pure-JAX reference. matmul_dtype=bf16 mirrors the kernel's MXU numerics."""
    w1, b1, w2, b2, w3, b3 = params
    x = x.reshape(x.shape[0], -1).astype(jnp.float32)

    def mm(a, w):
        return jax.lax.dot(a.astype(matmul_dtype), w.astype(matmul_dtype),
                           preferred_element_type=jnp.float32)

    h1 = jnp.maximum(mm(x, w1) + b1, 0.0)
    h2 = jnp.maximum(mm(h1, w2) + b2, 0.0)
    logits = mm(h2, w3) + b3
    return jax.nn.log_softmax(logits, axis=1)


# --------------------------------------------------------------------------------- main
if __name__ == "__main__":
    key = jax.random.PRNGKey(0)
    kx, kp = jax.random.split(key)

    batch = 8
    x = jax.random.normal(kx, (batch, 1, 28, 28), jnp.float32)  # MNIST-shaped digits
    params = init_params(kp)

    out = mlp_forward(x, params)
    out = jax.block_until_ready(out)
    assert out.shape == (batch, OUT_DIM)

    # 1) precision-matched reference (bf16 matmul inputs, f32 accumulation)
    ref_bf16 = reference_forward(x, params, matmul_dtype=jnp.bfloat16)
    assert jnp.allclose(out, ref_bf16, atol=2e-3, rtol=2e-3), "mismatch vs bf16 reference"

    # 2) full-f32 reference, loose tolerance (bf16 matmul-input quantization)
    ref_f32 = reference_forward(x, params, matmul_dtype=jnp.float32)
    assert jnp.allclose(out, ref_f32, atol=5e-2, rtol=5e-2), "mismatch vs f32 reference"

    # 3) log-probabilities must sum (in prob space) to 1 per row
    assert jnp.allclose(jnp.sum(jnp.exp(out), axis=1), 1.0, atol=1e-3)

    print("KERNEL_OK")
</pallas_src>

<mosaic_0001>
module attributes {stable_mosaic.version = 11 : i64} {
  func.func @mlp_kernel(%arg0: i32, %arg1: memref<16x784xbf16, #tpu.memory_space<vmem>>, %arg2: memref<784x128xbf16, #tpu.memory_space<vmem>>, %arg3: memref<1x128xf32, #tpu.memory_space<vmem>>, %arg4: memref<128x64xbf16, #tpu.memory_space<vmem>>, %arg5: memref<1x64xf32, #tpu.memory_space<vmem>>, %arg6: memref<64x128xbf16, #tpu.memory_space<vmem>>, %arg7: memref<1x128xf32, #tpu.memory_space<vmem>>, %arg8: memref<16x128xf32, #tpu.memory_space<vmem>>) attributes {dimension_semantics = [#tpu.dimension_semantics<parallel>], iteration_bounds = array<i64: 1>, scalar_prefetch = 0 : i64, scratch_operands = 0 : i64, tpu.core_type = #tpu.core_type<tc>, window_params = [{transform_indices = @transform_0, window_bounds = array<i64: 16, 784>}, {pipeline_mode = #tpu.pipeline_mode<synchronous>, transform_indices = @transform_1, window_bounds = array<i64: 784, 128>}, {pipeline_mode = #tpu.pipeline_mode<synchronous>, transform_indices = @transform_2, window_bounds = array<i64: 1, 128>}, {pipeline_mode = #tpu.pipeline_mode<synchronous>, transform_indices = @transform_3, window_bounds = array<i64: 128, 64>}, {pipeline_mode = #tpu.pipeline_mode<synchronous>, transform_indices = @transform_4, window_bounds = array<i64: 1, 64>}, {pipeline_mode = #tpu.pipeline_mode<synchronous>, transform_indices = @transform_5, window_bounds = array<i64: 64, 128>}, {pipeline_mode = #tpu.pipeline_mode<synchronous>, transform_indices = @transform_6, window_bounds = array<i64: 1, 128>}, {transform_indices = @transform_7, window_bounds = array<i64: 16, 128>}]} {
    %c0 = arith.constant 0 : index
    %c0_0 = arith.constant 0 : index
    %0 = vector.load %arg1[%c0, %c0_0] : memref<16x784xbf16, #tpu.memory_space<vmem>>, vector<16x784xbf16>
    %c0_1 = arith.constant 0 : index
    %c0_2 = arith.constant 0 : index
    %1 = vector.load %arg2[%c0_1, %c0_2] : memref<784x128xbf16, #tpu.memory_space<vmem>>, vector<784x128xbf16>
    %cst = arith.constant dense<0.000000e+00> : vector<16x128xf32>
    %2 = tpu.matmul %0, %1, %cst {dimension_numbers = #tpu.dot_dimension_numbers<[1], [0], [0], [1], [0, 0, 1, 1], [], []>} : vector<16x784xbf16>, vector<784x128xbf16>, vector<16x128xf32> -> vector<16x128xf32>
    %c0_3 = arith.constant 0 : index
    %c0_4 = arith.constant 0 : index
    %3 = vector.load %arg3[%c0_3, %c0_4] : memref<1x128xf32, #tpu.memory_space<vmem>>, vector<1x128xf32>
    %4 = vector.broadcast %3 : vector<1x128xf32> to vector<16x128xf32>
    %5 = arith.addf %2, %4 : vector<16x128xf32>
    %cst_5 = arith.constant 0.000000e+00 : f32
    %6 = vector.broadcast %cst_5 : f32 to vector<16x128xf32>
    %7 = arith.maximumf %5, %6 : vector<16x128xf32>
    %8 = arith.truncf %7 : vector<16x128xf32> to vector<16x128xbf16>
    %c0_6 = arith.constant 0 : index
    %c0_7 = arith.constant 0 : index
    %9 = vector.load %arg4[%c0_6, %c0_7] : memref<128x64xbf16, #tpu.memory_space<vmem>>, vector<128x64xbf16>
    %cst_8 = arith.constant dense<0.000000e+00> : vector<16x64xf32>
    %10 = tpu.matmul %8, %9, %cst_8 {dimension_numbers = #tpu.dot_dimension_numbers<[1], [0], [0], [1], [0, 0, 1, 1], [], []>} : vector<16x128xbf16>, vector<128x64xbf16>, vector<16x64xf32> -> vector<16x64xf32>
    %c0_9 = arith.constant 0 : index
    %c0_10 = arith.constant 0 : index
    %11 = vector.load %arg5[%c0_9, %c0_10] : memref<1x64xf32, #tpu.memory_space<vmem>>, vector<1x64xf32>
    %12 = vector.broadcast %11 : vector<1x64xf32> to vector<16x64xf32>
    %13 = arith.addf %10, %12 : vector<16x64xf32>
    %cst_11 = arith.constant 0.000000e+00 : f32
    %14 = vector.broadcast %cst_11 : f32 to vector<16x64xf32>
    %15 = arith.maximumf %13, %14 : vector<16x64xf32>
    %16 = arith.truncf %15 : vector<16x64xf32> to vector<16x64xbf16>
    %c0_12 = arith.constant 0 : index
    %c0_13 = arith.constant 0 : index
    %17 = vector.load %arg6[%c0_12, %c0_13] : memref<64x128xbf16, #tpu.memory_space<vmem>>, vector<64x128xbf16>
    %cst_14 = arith.constant dense<0.000000e+00> : vector<16x128xf32>
    %18 = tpu.matmul %16, %17, %cst_14 {dimension_numbers = #tpu.dot_dimension_numbers<[1], [0], [0], [1], [0, 0, 1, 1], [], []>} : vector<16x64xbf16>, vector<64x128xbf16>, vector<16x128xf32> -> vector<16x128xf32>
    %c0_15 = arith.constant 0 : index
    %c0_16 = arith.constant 0 : index
    %19 = vector.load %arg7[%c0_15, %c0_16] : memref<1x128xf32, #tpu.memory_space<vmem>>, vector<1x128xf32>
    %20 = vector.broadcast %19 : vector<1x128xf32> to vector<16x128xf32>
    %21 = arith.addf %18, %20 : vector<16x128xf32>
    %cst_17 = arith.constant dense<0xFF800000> : vector<16xf32>
    %22 = vector.multi_reduction <maximumf>, %21, %cst_17 [1] : vector<16x128xf32> to vector<16xf32>
    %23 = vector.shape_cast %22 : vector<16xf32> to vector<16x1xf32>
    %24 = vector.broadcast %23 : vector<16x1xf32> to vector<16x128xf32>
    %25 = arith.subf %21, %24 : vector<16x128xf32>
    %26 = math.exp %25 : vector<16x128xf32>
    %cst_18 = arith.constant dense<0.000000e+00> : vector<16xf32>
    %27 = vector.multi_reduction <add>, %26, %cst_18 [1] : vector<16x128xf32> to vector<16xf32>
    %28 = vector.shape_cast %27 : vector<16xf32> to vector<16x1xf32>
    %29 = math.log %28 : vector<16x1xf32>
    %30 = vector.broadcast %29 : vector<16x1xf32> to vector<16x128xf32>
    %31 = arith.subf %25, %30 : vector<16x128xf32>
    %c0_19 = arith.constant 0 : index
    %c0_20 = arith.constant 0 : index
    %32 = vector.load %arg8[%c0_19, %c0_20] : memref<16x128xf32, #tpu.memory_space<vmem>>, vector<16x128xf32>
    tpu.vector_store %arg8[%c0_19, %c0_20], %31 {strides = array<i32>} : memref<16x128xf32, #tpu.memory_space<vmem>>, vector<16x128xf32>,
    return
  }
  func.func @transform_0(%arg0: i32) -> (i32, i32) {
    %c0_i32 = arith.constant 0 : i32
    %c0_i32_0 = arith.constant 0 : i32
    return %arg0, %c0_i32 : i32, i32
  }
  func.func @transform_1(%arg0: i32) -> (i32, i32) {
    %c0_i32 = arith.constant 0 : i32
    %c0_i32_0 = arith.constant 0 : i32
    %c0_i32_1 = arith.constant 0 : i32
    return %c0_i32, %c0_i32_0 : i32, i32
  }
  func.func @transform_2(%arg0: i32) -> (i32, i32) {
    %c0_i32 = arith.constant 0 : i32
    %c0_i32_0 = arith.constant 0 : i32
    %c0_i32_1 = arith.constant 0 : i32
    return %c0_i32, %c0_i32_0 : i32, i32
  }
  func.func @transform_3(%arg0: i32) -> (i32, i32) {
    %c0_i32 = arith.constant 0 : i32
    %c0_i32_0 = arith.constant 0 : i32
    %c0_i32_1 = arith.constant 0 : i32
    return %c0_i32, %c0_i32_0 : i32, i32
  }
  func.func @transform_4(%arg0: i32) -> (i32, i32) {
    %c0_i32 = arith.constant 0 : i32
    %c0_i32_0 = arith.constant 0 : i32
    %c0_i32_1 = arith.constant 0 : i32
    return %c0_i32, %c0_i32_0 : i32, i32
  }
  func.func @transform_5(%arg0: i32) -> (i32, i32) {
    %c0_i32 = arith.constant 0 : i32
    %c0_i32_0 = arith.constant 0 : i32
    %c0_i32_1 = arith.constant 0 : i32
    return %c0_i32, %c0_i32_0 : i32, i32
  }
  func.func @transform_6(%arg0: i32) -> (i32, i32) {
    %c0_i32 = arith.constant 0 : i32
    %c0_i32_0 = arith.constant 0 : i32
    %c0_i32_1 = arith.constant 0 : i32
    return %c0_i32, %c0_i32_0 : i32, i32
  }
  func.func @transform_7(%arg0: i32) -> (i32, i32) {
    %c0_i32 = arith.constant 0 : i32
    %c0_i32_0 = arith.constant 0 : i32
    return %arg0, %c0_i32 : i32, i32
  }
}

</mosaic_0001>

<llo_original>
// kernel: tpu_custom_call.1
$region0: #{tpu_custom_call.1}
  #allocation0 [shape = 'u32[]', space=smem, size = 0x4, offset = 0x4, fixed_abs, tag = 'smem constant byte address 0x4 - core index']
  #allocation1 [shape = 'u32[144,128]{1,0:T(1,128)}', space=vmem, size = 0x12000, scoped, tag = 'internal scratch']
  %s0 = inlined_call_operand.vmem [shape: bf16[16,784], index: 0, kind: input, shape index: {}]
  %s1 = inlined_call_operand.hbm [shape: bf16[784,128], index: 1, kind: input, shape index: {}]
  %s2 = inlined_call_operand.vmem [shape: f32[1,128], index: 2, kind: input, shape index: {}]
  %s3 = inlined_call_operand.vmem [shape: bf16[128,64], index: 3, kind: input, shape index: {}]
  %s4 = inlined_call_operand.vmem [shape: f32[1,64], index: 4, kind: input, shape index: {}]
  %s5 = inlined_call_operand.vmem [shape: bf16[64,128], index: 5, kind: input, shape index: {}]
  %s6 = inlined_call_operand.vmem [shape: f32[1,128], index: 6, kind: input, shape index: {}]
  %s7 = inlined_call_operand.hbm [shape: f32[16,128], index: 7, kind: output, shape index: {}]
  %s8 = sld [smem:[#allocation0]]
  $region42: #{tpu_custom_call.1} parent=0
    _
  %s10 = ssub.s32 1, %s8
  %s11 = scalar_select 0, %s10, %s8
  $region1: #{tpu_custom_call.1} parent=0
    #allocation2 [shape = 'u8[200704]{0}', space=vmem, size = 0x31000, scoped, tag = 'input window, operand 1, single buffered']
    #allocation3 [shape = 's32[1]{0}', space=sflag, size = 0x4, scoped, tag = 'scoped memory for tpu_custom_call.1']
    #allocation4 [shape = 's32[1]{0}', space=sflag, size = 0x4, scoped, tag = 'scoped memory for tpu_custom_call.1']
    #allocation5 [shape = 'u8[8192]{0}', space=vmem, size = 0x2000, scoped, tag = 'output window, operand 0, single buffered']
    %12 = vsyncpa [#allocation3], 0
    %13 = vsyncpa [#allocation4], 0
    // Predicated region
    $region2: #{tpu_custom_call.1} parent=1 // pred_check
      _
    $region3: #{tpu_custom_call.1} parent=1 // pred_check_branch
      %15 = sbr.rel (0) target = $region5
    $region4: #{tpu_custom_call.1} parent=1 // pred_region
      _
    $region5: #{tpu_custom_call.1} parent=1 // pred_fallthru
      _
    // Predicated region
    $region6: #{tpu_custom_call.1} parent=1 // pred_check
      _
    $region7: #{tpu_custom_call.1} parent=1 // pred_check_branch
      %17 = sbr.rel (0) target = $region9
    $region8: #{tpu_custom_call.1} parent=1 // pred_region
      %s19 = ssub.s32 6272, 6272
      %20 = vsyncadd [#allocation3], %s19
      %s21 = sshll.u32 [#allocation2], 4
      %s22 = int_to_ptr.vmem [resolvable:$true] %s21
      %27 = dma.hbm_to_vmem [thread:$0]  %s1, 6272, %s22, [#allocation3], 64, 64, 4
    $region9: #{tpu_custom_call.1} parent=1 // pred_fallthru
      _
    // Predicated region
    $region10: #{tpu_custom_call.1} parent=1 // pred_check
      _
    $region11: #{tpu_custom_call.1} parent=1 // pred_check_branch
      %29 = sbr.rel (0) target = $region13
    $region12: #{tpu_custom_call.1} parent=1 // pred_region
      _
    $region13: #{tpu_custom_call.1} parent=1 // pred_fallthru
      _
    // Predicated region
    $region14: #{tpu_custom_call.1} parent=1 // pred_check
      _
    $region15: #{tpu_custom_call.1} parent=1 // pred_check_branch
      %31 = sbr.rel (0) target = $region17
    $region16: #{tpu_custom_call.1} parent=1 // pred_region
      _
    $region17: #{tpu_custom_call.1} parent=1 // pred_fallthru
      _
    // Predicated region
    $region18: #{tpu_custom_call.1} parent=1 // pred_check
      _
    $region19: #{tpu_custom_call.1} parent=1 // pred_check_branch
      %33 = sbr.rel (0) target = $region21
    $region20: #{tpu_custom_call.1} parent=1 // pred_region
      _
    $region21: #{tpu_custom_call.1} parent=1 // pred_fallthru
      _
    // Predicated region
    $region22: #{tpu_custom_call.1} parent=1 // pred_check
      _
    $region23: #{tpu_custom_call.1} parent=1 // pred_check_branch
      %35 = sbr.rel (0) target = $region25
    $region24: #{tpu_custom_call.1} parent=1 // pred_region
      _
    $region25: #{tpu_custom_call.1} parent=1 // pred_fallthru
      _
    // Predicated region
    $region26: #{tpu_custom_call.1} parent=1 // pred_check
      _
    $region27: #{tpu_custom_call.1} parent=1 // pred_check_branch
      %37 = sbr.rel (0) target = $region29
    $region28: #{tpu_custom_call.1} parent=1 // pred_region
      _
    $region29: #{tpu_custom_call.1} parent=1 // pred_fallthru
      _
    // Predicated region
    $region30: #{tpu_custom_call.1} parent=1 // pred_check
      _
    $region31: #{tpu_custom_call.1} parent=1 // pred_check_branch
      %39 = sbr.rel (0) target = $region33
    $region32: #{tpu_custom_call.1} parent=1 // pred_region
      %40 = dma.done [#allocation3], 6272
    $region33: #{tpu_custom_call.1} parent=1 // pred_fallthru
      _
    %v42 = vld [vmem:[%s0] sm:$0xff]
    %v43 = vld [vmem:[%s0 + $0x8] sm:$0xff]
    %v44 = vld [vmem:[%s0 + $0x10] sm:$0xff]
    %v45 = vld [vmem:[%s0 + $0x18] sm:$0xf]
    %v46 = vld [vmem:[%s0 + $0x1c] sm:$0xff]
    %v47 = vld [vmem:[%s0 + $0x24] sm:$0xff]
    %v48 = vld [vmem:[%s0 + $0x2c] sm:$0xff]
    %v49 = vld [vmem:[%s0 + $0x34] sm:$0xf]
    %v50 = vld [vmem:[#allocation2] sm:$0xf]
    %v51 = vld [vmem:[#allocation2 + $0x4] sm:$0xf]
    %v52 = vld [vmem:[#allocation2 + $0x8] sm:$0xf]
    %v53 = vld [vmem:[#allocation2 + $0xc] sm:$0xf]
    %v54 = vld [vmem:[#allocation2 + $0x10] sm:$0xf]
    %v55 = vld [vmem:[#allocation2 + $0x14] sm:$0xf]
    %v56 = vld [vmem:[#allocation2 + $0x18] sm:$0xf]
    %v57 = vld [vmem:[#allocation2 + $0x1c] sm:$0xf]
    %v58 = vld [vmem:[#allocation2 + $0x20] sm:$0xf]
    %v59 = vld [vmem:[#allocation2 + $0x24] sm:$0xf]
    %v60 = vld [vmem:[#allocation2 + $0x28] sm:$0xf]
    %v61 = vld [vmem:[#allocation2 + $0x2c] sm:$0xf]
    %v62 = vld [vmem:[#allocation2 + $0x30] sm:$0xf]
    %v63 = vld [vmem:[#allocation2 + $0x34] sm:$0xf]
    %v64 = vld [vmem:[#allocation2 + $0x38] sm:$0xf]
    %v65 = vld [vmem:[#allocation2 + $0x3c] sm:$0xf]
    %v66 = vld [vmem:[#allocation2 + $0x40] sm:$0xf]
    %v67 = vld [vmem:[#allocation2 + $0x44] sm:$0xf]
    %v68 = vld [vmem:[#allocation2 + $0x48] sm:$0xf]
    %v69 = vld [vmem:[#allocation2 + $0x4c] sm:$0xf]
    %v70 = vld [vmem:[#allocation2 + $0x50] sm:$0xf]
    %v71 = vld [vmem:[#allocation2 + $0x54] sm:$0xf]
    %v72 = vld [vmem:[#allocation2 + $0x58] sm:$0xf]
    %v73 = vld [vmem:[#allocation2 + $0x5c] sm:$0xf]
    %v74 = vld [vmem:[#allocation2 + $0x60] sm:$0xf]
    %v75 = vld [vmem:[#allocation2 + $0x64] sm:$0xf]
    %v76 = vld [vmem:[#allocation2 + $0x68] sm:$0xf]
    %v77 = vld [vmem:[#allocation2 + $0x6c] sm:$0xf]
    %v78 = vld [vmem:[#allocation2 + $0x70] sm:$0xf]
    %v79 = vld [vmem:[#allocation2 + $0x74] sm:$0xf]
    %v80 = vld [vmem:[#allocation2 + $0x78] sm:$0xf]
    %v81 = vld [vmem:[#allocation2 + $0x7c] sm:$0xf]
    %v82 = vld [vmem:[#allocation2 + $0x80] sm:$0xf]
    %v83 = vld [vmem:[#allocation2 + $0x84] sm:$0xf]
    %v84 = vld [vmem:[#allocation2 + $0x88] sm:$0xf]
    %v85 = vld [vmem:[#allocation2 + $0x8c] sm:$0xf]
    %v86 = vld [vmem:[#allocation2 + $0x90] sm:$0xf]
    %v87 = vld [vmem:[#allocation2 + $0x94] sm:$0xf]
    %v88 = vld [vmem:[#allocation2 + $0x98] sm:$0xf]
    %v89 = vld [vmem:[#allocation2 + $0x9c] sm:$0xf]
    %v90 = vld [vmem:[#allocation2 + $0xa0] sm:$0xf]
    %v91 = vld [vmem:[#allocation2 + $0xa4] sm:$0xf]
    %v92 = vld [vmem:[#allocation2 + $0xa8] sm:$0xf]
    %v93 = vld [vmem:[#allocation2 + $0xac] sm:$0xf]
    %v94 = vld [vmem:[#allocation2 + $0xb0] sm:$0xf]
    %v95 = vld [vmem:[#allocation2 + $0xb4] sm:$0xf]
    %v96 = vld [vmem:[#allocation2 + $0xb8] sm:$0xf]
    %v97 = vld [vmem:[#allocation2 + $0xbc] sm:$0xf]
    %v98 = vld [vmem:[#allocation2 + $0xc0] sm:$0xf]
    %v99 = vld [vmem:[#allocation2 + $0xc4] sm:$0xf]
    %v100 = vld [vmem:[#allocation2 + $0xc8] sm:$0xf]
    %v101 = vld [vmem:[#allocation2 + $0xcc] sm:$0xf]
    %v102 = vld [vmem:[#allocation2 + $0xd0] sm:$0xf]
    %v103 = vld [vmem:[#allocation2 + $0xd4] sm:$0xf]
    %v104 = vld [vmem:[#allocation2 + $0xd8] sm:$0xf]
    %v105 = vld [vmem:[#allocation2 + $0xdc] sm:$0xf]
    %v106 = vld [vmem:[#allocation2 + $0xe0] sm:$0xf]
    %v107 = vld [vmem:[#allocation2 + $0xe4] sm:$0xf]
    %v108 = vld [vmem:[#allocation2 + $0xe8] sm:$0xf]
    %v109 = vld [vmem:[#allocation2 + $0xec] sm:$0xf]
    %v110 = vld [vmem:[#allocation2 + $0xf0] sm:$0xf]
    %v111 = vld [vmem:[#allocation2 + $0xf4] sm:$0xf]
    %v112 = vld [vmem:[#allocation2 + $0xf8] sm:$0xf]
    %v113 = vld [vmem:[#allocation2 + $0xfc] sm:$0xf]
    %v114 = vld [vmem:[#allocation2 + $0x100] sm:$0xf]
    %v115 = vld [vmem:[#allocation2 + $0x104] sm:$0xf]
    %v116 = vld [vmem:[#allocation2 + $0x108] sm:$0xf]
    %v117 = vld [vmem:[#allocation2 + $0x10c] sm:$0xf]
    %v118 = vld [vmem:[#allocation2 + $0x110] sm:$0xf]
    %v119 = vld [vmem:[#allocation2 + $0x114] sm:$0xf]
    %v120 = vld [vmem:[#allocation2 + $0x118] sm:$0xf]
    %v121 = vld [vmem:[#allocation2 + $0x11c] sm:$0xf]
    %v122 = vld [vmem:[#allocation2 + $0x120] sm:$0xf]
    %v123 = vld [vmem:[#allocation2 + $0x124] sm:$0xf]
    %v124 = vld [vmem:[#allocation2 + $0x128] sm:$0xf]
    %v125 = vld [vmem:[#allocation2 + $0x12c] sm:$0xf]
    %v126 = vld [vmem:[#allocation2 + $0x130] sm:$0xf]
    %v127 = vld [vmem:[#allocation2 + $0x134] sm:$0xf]
    %v128 = vld [vmem:[#allocation2 + $0x138] sm:$0xf]
    %v129 = vld [vmem:[#allocation2 + $0x13c] sm:$0xf]
    %v130 = vld [vmem:[#allocation2 + $0x140] sm:$0xf]
    %v131 = vld [vmem:[#allocation2 + $0x144] sm:$0xf]
    %v132 = vld [vmem:[#allocation2 + $0x148] sm:$0xf]
    %v133 = vld [vmem:[#allocation2 + $0x14c] sm:$0xf]
    %v134 = vld [vmem:[#allocation2 + $0x150] sm:$0xf]
    %v135 = vld [vmem:[#allocation2 + $0x154] sm:$0xf]
    %v136 = vld [vmem:[#allocation2 + $0x158] sm:$0xf]
    %v137 = vld [vmem:[#allocation2 + $0x15c] sm:$0xf]
    %v138 = vld [vmem:[#allocation2 + $0x160] sm:$0xf]
    %v139 = vld [vmem:[#allocation2 + $0x164] sm:$0xf]
    %v140 = vld [vmem:[#allocation2 + $0x168] sm:$0xf]
    %v141 = vld [vmem:[#allocation2 + $0x16c] sm:$0xf]
    %v142 = vld [vmem:[#allocation2 + $0x170] sm:$0xf]
    %v143 = vld [vmem:[#allocation2 + $0x174] sm:$0xf]
    %v144 = vld [vmem:[#allocation2 + $0x178] sm:$0xf]
    %v145 = vld [vmem:[#allocation2 + $0x17c] sm:$0xf]
    %v146 = vld [vmem:[#allocation2 + $0x180] sm:$0xf]
    %v147 = vld [vmem:[#allocation2 + $0x184] sm:$0xf]
    %v148 = vld [vmem:[%s2] sm:$0x1]
    %v150 = vlaneseq
    %v151 = vshrl.u32 %v150, 7
    %v152 = vsub.s32 0, %v151
    %v153 = vrot.slane %v148, %v152
    %v163 = vunpack.c.l.b16 %v42
    %v164 = vunpack.c.h.b16 %v42
    %v165 = vunpack.c.l.b16 %v43
    %v166 = vunpack.c.h.b16 %v43
    %v167 = vunpack.c.l.b16 %v44
    %v168 = vunpack.c.h.b16 %v44
    %v169 = vunpack.c.l.b16 %v45
    %v170 = vunpack.c.l.b16 %v46
    %v171 = vunpack.c.h.b16 %v46
    %v172 = vunpack.c.l.b16 %v47
    %v173 = vunpack.c.h.b16 %v47
    %v174 = vunpack.c.l.b16 %v48
    %v175 = vunpack.c.h.b16 %v48
    %v176 = vunpack.c.l.b16 %v49
    %v177 = vpack.c.b16 %v170, %v163
    %v178 = vpack.c.b16 %v171, %v164
    %v179 = vpack.c.b16 %v172, %v165
    %v180 = vpack.c.b16 %v173, %v166
    %v181 = vpack.c.b16 %v174, %v167
    %v182 = vpack.c.b16 %v175, %v168
    %v183 = vpack.c.b16 %v176, %v169
    %v288 = vunpack.c.l.b16 %v50
    %v289 = vunpack.c.l.b16 %v51
    %v290 = vunpack.c.l.b16 %v52
    %v291 = vunpack.c.l.b16 %v53
    %v292 = vunpack.c.l.b16 %v54
    %v293 = vunpack.c.l.b16 %v55
    %v294 = vunpack.c.l.b16 %v56
    %v295 = vunpack.c.l.b16 %v57
    %v296 = vunpack.c.l.b16 %v58
    %v297 = vunpack.c.l.b16 %v59
    %v298 = vunpack.c.l.b16 %v60
    %v299 = vunpack.c.l.b16 %v61
    %v300 = vunpack.c.l.b16 %v62
    %v301 = vunpack.c.l.b16 %v63
    %v302 = vunpack.c.l.b16 %v64
    %v303 = vunpack.c.l.b16 %v65
    %v304 = vunpack.c.l.b16 %v66
    %v305 = vunpack.c.l.b16 %v67
    %v306 = vunpack.c.l.b16 %v68
    %v307 = vunpack.c.l.b16 %v69
    %v308 = vunpack.c.l.b16 %v70
    %v309 = vunpack.c.l.b16 %v71
    %v310 = vunpack.c.l.b16 %v72
    %v311 = vunpack.c.l.b16 %v73
    %v312 = vunpack.c.l.b16 %v74
    %v313 = vunpack.c.l.b16 %v75
    %v314 = vunpack.c.l.b16 %v76
    %v315 = vunpack.c.l.b16 %v77
    %v316 = vunpack.c.l.b16 %v78
    %v317 = vunpack.c.l.b16 %v79
    %v318 = vunpack.c.l.b16 %v80
    %v319 = vunpack.c.l.b16 %v81
    %v320 = vunpack.c.l.b16 %v82
    %v321 = vunpack.c.l.b16 %v83
    %v322 = vunpack.c.l.b16 %v84
    %v323 = vunpack.c.l.b16 %v85
    %v324 = vunpack.c.l.b16 %v86
    %v325 = vunpack.c.l.b16 %v87
    %v326 = vunpack.c.l.b16 %v88
    %v327 = vunpack.c.l.b16 %v89
    %v328 = vunpack.c.l.b16 %v90
    %v329 = vunpack.c.l.b16 %v91
    %v330 = vunpack.c.l.b16 %v92
    %v331 = vunpack.c.l.b16 %v93
    %v332 = vunpack.c.l.b16 %v94
    %v333 = vunpack.c.l.b16 %v95
    %v334 = vunpack.c.l.b16 %v96
    %v335 = vunpack.c.l.b16 %v97
    %v336 = vunpack.c.l.b16 %v98
    %v337 = vunpack.c.l.b16 %v99
    %v338 = vunpack.c.l.b16 %v100
    %v339 = vunpack.c.l.b16 %v101
    %v340 = vunpack.c.l.b16 %v102
    %v341 = vunpack.c.l.b16 %v103
    %v342 = vunpack.c.l.b16 %v104
    %v343 = vunpack.c.l.b16 %v105
    %v344 = vunpack.c.l.b16 %v106
    %v345 = vunpack.c.l.b16 %v107
    %v346 = vunpack.c.l.b16 %v108
    %v347 = vunpack.c.l.b16 %v109
    %v348 = vunpack.c.l.b16 %v110
    %v349 = vunpack.c.l.b16 %v111
    %v350 = vunpack.c.l.b16 %v112
    %v351 = vunpack.c.l.b16 %v113
    %v352 = vunpack.c.l.b16 %v114
    %v353 = vunpack.c.l.b16 %v115
    %v354 = vunpack.c.l.b16 %v116
    %v355 = vunpack.c.l.b16 %v117
    %v356 = vunpack.c.l.b16 %v118
    %v357 = vunpack.c.l.b16 %v119
    %v358 = vunpack.c.l.b16 %v120
    %v359 = vunpack.c.l.b16 %v121
    %v360 = vunpack.c.l.b16 %v122
    %v361 = vunpack.c.l.b16 %v123
    %v362 = vunpack.c.l.b16 %v124
    %v363 = vunpack.c.l.b16 %v125
    %v364 = vunpack.c.l.b16 %v126
    %v365 = vunpack.c.l.b16 %v127
    %v366 = vunpack.c.l.b16 %v128
    %v367 = vunpack.c.l.b16 %v129
    %v368 = vunpack.c.l.b16 %v130
    %v369 = vunpack.c.l.b16 %v131
    %v370 = vunpack.c.l.b16 %v132
    %v371 = vunpack.c.l.b16 %v133
    %v372 = vunpack.c.l.b16 %v134
    %v373 = vunpack.c.l.b16 %v135
    %v374 = vunpack.c.l.b16 %v136
    %v375 = vunpack.c.l.b16 %v137
    %v376 = vunpack.c.l.b16 %v138
    %v377 = vunpack.c.l.b16 %v139
    %v378 = vunpack.c.l.b16 %v140
    %v379 = vunpack.c.l.b16 %v141
    %v380 = vunpack.c.l.b16 %v142
    %v381 = vunpack.c.l.b16 %v143
    %v382 = vunpack.c.l.b16 %v144
    %v383 = vunpack.c.l.b16 %v145
    %v384 = vunpack.c.l.b16 %v146
    %v385 = vunpack.c.l.b16 %v147
    %v386 = vpack.c.b16 %v289, %v288
    %v387 = vpack.c.b16 %v291, %v290
    %v388 = vpack.c.b16 %v293, %v292
    %v389 = vpack.c.b16 %v295, %v294
    %v390 = vpack.c.b16 %v297, %v296
    %v391 = vpack.c.b16 %v299, %v298
    %v392 = vpack.c.b16 %v301, %v300
    %v393 = vpack.c.b16 %v303, %v302
    %v394 = vpack.c.b16 %v305, %v304
    %v395 = vpack.c.b16 %v307, %v306
    %v396 = vpack.c.b16 %v309, %v308
    %v397 = vpack.c.b16 %v311, %v310
    %v398 = vpack.c.b16 %v313, %v312
    %v399 = vpack.c.b16 %v315, %v314
    %v400 = vpack.c.b16 %v317, %v316
    %v401 = vpack.c.b16 %v319, %v318
    %v402 = vpack.c.b16 %v321, %v320
    %v403 = vpack.c.b16 %v323, %v322
    %v404 = vpack.c.b16 %v325, %v324
    %v405 = vpack.c.b16 %v327, %v326
    %v406 = vpack.c.b16 %v329, %v328
    %v407 = vpack.c.b16 %v331, %v330
    %v408 = vpack.c.b16 %v333, %v332
    %v409 = vpack.c.b16 %v335, %v334
    %v410 = vpack.c.b16 %v337, %v336
    %v411 = vpack.c.b16 %v339, %v338
    %v412 = vpack.c.b16 %v341, %v340
    %v413 = vpack.c.b16 %v343, %v342
    %v414 = vpack.c.b16 %v345, %v344
    %v415 = vpack.c.b16 %v347, %v346
    %v416 = vpack.c.b16 %v349, %v348
    %v417 = vpack.c.b16 %v351, %v350
    %v418 = vpack.c.b16 %v353, %v352
    %v419 = vpack.c.b16 %v355, %v354
    %v420 = vpack.c.b16 %v357, %v356
    %v421 = vpack.c.b16 %v359, %v358
    %v422 = vpack.c.b16 %v361, %v360
    %v423 = vpack.c.b16 %v363, %v362
    %v424 = vpack.c.b16 %v365, %v364
    %v425 = vpack.c.b16 %v367, %v366
    %v426 = vpack.c.b16 %v369, %v368
    %v427 = vpack.c.b16 %v371, %v370
    %v428 = vpack.c.b16 %v373, %v372
    %v429 = vpack.c.b16 %v375, %v374
    %v430 = vpack.c.b16 %v377, %v376
    %v431 = vpack.c.b16 %v379, %v378
    %v432 = vpack.c.b16 %v381, %v380
    %v433 = vpack.c.b16 %v383, %v382
    %v434 = vpack.c.b16 %v385, %v384
    %vm484 = vcmask 130048
    %v486 = vsel %vm484, %v183, 0
    %488 = vmatprep.subr.bf16.mxu0 0
    %489 = vmatpush1.bf16.msra.mxu0 %v386
    %490 = vmatprep.subr.bf16.mxu0 0
    %491 = vmatpush1.bf16.msra.mxu0 %v387
    %492 = vmatprep.subr.bf16.mxu0 0
    %493 = vmatpush1.bf16.msra.mxu0 %v388
    %494 = vmatprep.subr.bf16.mxu0 0
    %495 = vmatpush1.bf16.msra.mxu0 %v389
    %496 = vmatprep.subr.bf16.mxu0 0
    %497 = vmatpush1.bf16.msra.mxu0 %v390
    %498 = vmatprep.subr.bf16.mxu0 0
    %499 = vmatpush1.bf16.msra.mxu0 %v391
    %500 = vmatprep.subr.bf16.mxu0 0
    %501 = vmatpush1.bf16.msra.mxu0 %v392
    %502 = vmatprep.subr.bf16.mxu0 0
    %503 = vmatpush1.bf16.msra.mxu0 %v393
    %504 = vmatprep.subr.bf16.mxu0 0
    %505 = vmatpush1.bf16.msra.mxu0 %v394
    %506 = vmatprep.subr.bf16.mxu0 0
    %507 = vmatpush1.bf16.msra.mxu0 %v395
    %508 = vmatprep.subr.bf16.mxu0 0
    %509 = vmatpush1.bf16.msra.mxu0 %v396
    %510 = vmatprep.subr.bf16.mxu0 0
    %511 = vmatpush1.bf16.msra.mxu0 %v397
    %512 = vmatprep.subr.bf16.mxu0 0
    %513 = vmatpush1.bf16.msra.mxu0 %v398
    %514 = vmatprep.subr.bf16.mxu0 0
    %515 = vmatpush1.bf16.msra.mxu0 %v399
    %516 = vmatprep.subr.bf16.mxu0 0
    %517 = vmatpush1.bf16.msra.mxu0 %v400
    %518 = vmatprep.subr.bf16.mxu0 0
    %519 = vmatpush1.bf16.msra.mxu0 %v401
    %520 = vmatprep.mubr.bf16.mxu0 %v178
    %521 = vmatmul.mubr.bf16.gmra.mrb[0].mxu0 %v177
    %v522 = vpop.f32.mrb[0].mxu0
    %v523 = vadd.f32 %v153, %v522
    %v524 = vpop.f32.mrb[0].mxu0
    %v525 = vpop.f32.mrb[0].mxu0
    %v526 = vadd.f32 %v153, %v525
    %v527 = vpop.f32.mrb[0].mxu0
    %528 = vdwg.mxu0
    %529 = vmatprep.subr.bf16.mxu0 0
    %530 = vmatpush1.bf16.msra.mxu0 %v402
    %531 = vmatprep.subr.bf16.mxu0 0
    %532 = vmatpush1.bf16.msra.mxu0 %v403
    %533 = vmatprep.subr.bf16.mxu0 0
    %534 = vmatpush1.bf16.msra.mxu0 %v404
    %535 = vmatprep.subr.bf16.mxu0 0
    %536 = vmatpush1.bf16.msra.mxu0 %v405
    %537 = vmatprep.subr.bf16.mxu0 0
    %538 = vmatpush1.bf16.msra.mxu0 %v406
    %539 = vmatprep.subr.bf16.mxu0 0
    %540 = vmatpush1.bf16.msra.mxu0 %v407
    %541 = vmatprep.subr.bf16.mxu0 0
    %542 = vmatpush1.bf16.msra.mxu0 %v408
    %543 = vmatprep.subr.bf16.mxu0 0
    %544 = vmatpush1.bf16.msra.mxu0 %v409
    %545 = vmatprep.subr.bf16.mxu0 0
    %546 = vmatpush1.bf16.msra.mxu0 %v410
    %547 = vmatprep.subr.bf16.mxu0 0
    %548 = vmatpush1.bf16.msra.mxu0 %v411
    %549 = vmatprep.subr.bf16.mxu0 0
    %550 = vmatpush1.bf16.msra.mxu0 %v412
    %551 = vmatprep.subr.bf16.mxu0 0
    %552 = vmatpush1.bf16.msra.mxu0 %v413
    %553 = vmatprep.subr.bf16.mxu0 0
    %554 = vmatpush1.bf16.msra.mxu0 %v414
    %555 = vmatprep.subr.bf16.mxu0 0
    %556 = vmatpush1.bf16.msra.mxu0 %v415
    %557 = vmatprep.subr.bf16.mxu0 0
    %558 = vmatpush1.bf16.msra.mxu0 %v416
    %559 = vmatprep.subr.bf16.mxu0 0
    %560 = vmatpush1.bf16.msra.mxu0 %v417
    %561 = vmatprep.mubr.bf16.mxu0 %v180
    %562 = vmatmul.mubr.bf16.gmra.mrb[0].mxu0 %v179
    %v563 = vpop.f32.mrb[0].mxu0
    %v564 = vadd.f32 %v523, %v563
    %v565 = vpop.f32.mrb[0].mxu0
    %v566 = vpop.f32.mrb[0].mxu0
    %v567 = vadd.f32 %v526, %v566
    %v568 = vpop.f32.mrb[0].mxu0
    %569 = vdwg.mxu0
    %570 = vmatprep.subr.bf16.mxu0 0
    %571 = vmatpush1.bf16.msra.mxu0 %v418
    %572 = vmatprep.subr.bf16.mxu0 0
    %573 = vmatpush1.bf16.msra.mxu0 %v419
    %574 = vmatprep.subr.bf16.mxu0 0
    %575 = vmatpush1.bf16.msra.mxu0 %v420
    %576 = vmatprep.subr.bf16.mxu0 0
    %577 = vmatpush1.bf16.msra.mxu0 %v421
    %578 = vmatprep.subr.bf16.mxu0 0
    %579 = vmatpush1.bf16.msra.mxu0 %v422
    %580 = vmatprep.subr.bf16.mxu0 0
    %581 = vmatpush1.bf16.msra.mxu0 %v423
    %582 = vmatprep.subr.bf16.mxu0 0
    %583 = vmatpush1.bf16.msra.mxu0 %v424
    %584 = vmatprep.subr.bf16.mxu0 0
    %585 = vmatpush1.bf16.msra.mxu0 %v425
    %586 = vmatprep.subr.bf16.mxu0 0
    %587 = vmatpush1.bf16.msra.mxu0 %v426
    %588 = vmatprep.subr.bf16.mxu0 0
    %589 = vmatpush1.bf16.msra.mxu0 %v427
    %590 = vmatprep.subr.bf16.mxu0 0
    %591 = vmatpush1.bf16.msra.mxu0 %v428
    %592 = vmatprep.subr.bf16.mxu0 0
    %593 = vmatpush1.bf16.msra.mxu0 %v429
    %594 = vmatprep.subr.bf16.mxu0 0
    %595 = vmatpush1.bf16.msra.mxu0 %v430
    %596 = vmatprep.subr.bf16.mxu0 0
    %597 = vmatpush1.bf16.msra.mxu0 %v431
    %598 = vmatprep.subr.bf16.mxu0 0
    %599 = vmatpush1.bf16.msra.mxu0 %v432
    %600 = vmatprep.subr.bf16.mxu0 0
    %601 = vmatpush1.bf16.msra.mxu0 %v433
    %602 = vmatprep.mubr.bf16.mxu0 %v182
    %603 = vmatmul.mubr.bf16.gmra.mrb[0].mxu0 %v181
    %v604 = vpop.f32.mrb[0].mxu0
    %v605 = vadd.f32 %v564, %v604
    %v606 = vpop.f32.mrb[0].mxu0
    %v607 = vpop.f32.mrb[0].mxu0
    %v608 = vadd.f32 %v567, %v607
    %v609 = vpop.f32.mrb[0].mxu0
    %610 = vdwg.mxu0
    %611 = vmatprep.subr.bf16.mxu0 0
    %612 = vmatpush1.bf16.msra.mxu0 %v434
    %613 = vmatprep.subr.bf16.mxu0 0
    %614 = vmatpush1.bf16.msra.mxu0 0
    %615 = vmatprep.subr.bf16.mxu0 0
    %616 = vmatpush1.bf16.msra.mxu0 0
    %617 = vmatprep.subr.bf16.mxu0 0
    %618 = vmatpush1.bf16.msra.mxu0 0
    %619 = vmatprep.subr.bf16.mxu0 0
    %620 = vmatpush1.bf16.msra.mxu0 0
    %621 = vmatprep.subr.bf16.mxu0 0
    %622 = vmatpush1.bf16.msra.mxu0 0
    %623 = vmatprep.subr.bf16.mxu0 0
    %624 = vmatpush1.bf16.msra.mxu0 0
    %625 = vmatprep.subr.bf16.mxu0 0
    %626 = vmatpush1.bf16.msra.mxu0 0
    %627 = vmatprep.subr.bf16.mxu0 0
    %628 = vmatpush1.bf16.msra.mxu0 0
    %629 = vmatprep.subr.bf16.mxu0 0
    %630 = vmatpush1.bf16.msra.mxu0 0
    %631 = vmatprep.subr.bf16.mxu0 0
    %632 = vmatpush1.bf16.msra.mxu0 0
    %633 = vmatprep.subr.bf16.mxu0 0
    %634 = vmatpush1.bf16.msra.mxu0 0
    %635 = vmatprep.subr.bf16.mxu0 0
    %636 = vmatpush1.bf16.msra.mxu0 0
    %637 = vmatprep.subr.bf16.mxu0 0
    %638 = vmatpush1.bf16.msra.mxu0 0
    %639 = vmatprep.subr.bf16.mxu0 0
    %640 = vmatpush1.bf16.msra.mxu0 0
    %641 = vmatprep.subr.bf16.mxu0 0
    %642 = vmatpush1.bf16.msra.mxu0 0
    %643 = vmatprep.mubr.bf16.mxu0 0
    %644 = vmatmul.mubr.bf16.gmra.mrb[0].mxu0 %v486
    %v645 = vpop.f32.mrb[0].mxu0
    %v646 = vadd.f32 %v605, %v645
    %v647 = vpop.f32.mrb[0].mxu0
    %v648 = vpop.f32.mrb[0].mxu0
    %v649 = vadd.f32 %v608, %v648
    %v650 = vpop.f32.mrb[0].mxu0
    %651 = vdwg.mxu0
    %v652 = vmax.f32 %v646, 0.0
    %v653 = vmax.f32 %v649, 0.0
    %v654 = vpack.c.bf16 %v653, %v652
    %v655 = vld [vmem:[%s3] sm:$0xf]
    %v656 = vld [vmem:[%s3 + $0x4] sm:$0xf]
    %v657 = vld [vmem:[%s3 + $0x8] sm:$0xf]
    %v658 = vld [vmem:[%s3 + $0xc] sm:$0xf]
    %v659 = vld [vmem:[%s3 + $0x10] sm:$0xf]
    %v660 = vld [vmem:[%s3 + $0x14] sm:$0xf]
    %v661 = vld [vmem:[%s3 + $0x18] sm:$0xf]
    %v662 = vld [vmem:[%s3 + $0x1c] sm:$0xf]
    %v663 = vld [vmem:[%s3 + $0x20] sm:$0xf]
    %v664 = vld [vmem:[%s3 + $0x24] sm:$0xf]
    %v665 = vld [vmem:[%s3 + $0x28] sm:$0xf]
    %v666 = vld [vmem:[%s3 + $0x2c] sm:$0xf]
    %v667 = vld [vmem:[%s3 + $0x30] sm:$0xf]
    %v668 = vld [vmem:[%s3 + $0x34] sm:$0xf]
    %v669 = vld [vmem:[%s3 + $0x38] sm:$0xf]
    %v670 = vld [vmem:[%s3 + $0x3c] sm:$0xf]
    %v671 = vld [vmem:[%s4] sm:$0x1]
    %v673 = vlaneseq
    %v674 = vshrl.u32 %v673, 7
    %v675 = vsub.s32 0, %v674
    %v676 = vrot.slane %v671, %v675
    %v694 = vunpack.c.l.b16 %v655
    %v695 = vunpack.c.l.b16 %v656
    %v696 = vunpack.c.l.b16 %v657
    %v697 = vunpack.c.l.b16 %v658
    %v698 = vunpack.c.l.b16 %v659
    %v699 = vunpack.c.l.b16 %v660
    %v700 = vunpack.c.l.b16 %v661
    %v701 = vunpack.c.l.b16 %v662
    %v702 = vunpack.c.l.b16 %v663
    %v703 = vunpack.c.l.b16 %v664
    %v704 = vunpack.c.l.b16 %v665
    %v705 = vunpack.c.l.b16 %v666
    %v706 = vunpack.c.l.b16 %v667
    %v707 = vunpack.c.l.b16 %v668
    %v708 = vunpack.c.l.b16 %v669
    %v709 = vunpack.c.l.b16 %v670
    %v710 = vpack.c.b16 %v695, %v694
    %v711 = vpack.c.b16 %v697, %v696
    %v712 = vpack.c.b16 %v699, %v698
    %v713 = vpack.c.b16 %v701, %v700
    %v714 = vpack.c.b16 %v703, %v702
    %v715 = vpack.c.b16 %v705, %v704
    %v716 = vpack.c.b16 %v707, %v706
    %v717 = vpack.c.b16 %v709, %v708
    %726 = vmatprep.subr.bf16.mxu0 0
    %727 = vmatpush1.bf16.msra.mxu0 %v710
    %728 = vmatprep.subr.bf16.mxu0 0
    %729 = vmatpush1.bf16.msra.mxu0 %v711
    %730 = vmatprep.subr.bf16.mxu0 0
    %731 = vmatpush1.bf16.msra.mxu0 %v712
    %732 = vmatprep.subr.bf16.mxu0 0
    %733 = vmatpush1.bf16.msra.mxu0 %v713
    %734 = vmatprep.subr.bf16.mxu0 0
    %735 = vmatpush1.bf16.msra.mxu0 %v714
    %736 = vmatprep.subr.bf16.mxu0 0
    %737 = vmatpush1.bf16.msra.mxu0 %v715
    %738 = vmatprep.subr.bf16.mxu0 0
    %739 = vmatpush1.bf16.msra.mxu0 %v716
    %740 = vmatprep.subr.bf16.mxu0 0
    %741 = vmatpush1.bf16.msra.mxu0 %v717
    %742 = vmatprep.subr.bf16.mxu0 0
    %743 = vmatpush1.bf16.msra.mxu0 0
    %744 = vmatprep.subr.bf16.mxu0 0
    %745 = vmatpush1.bf16.msra.mxu0 0
    %746 = vmatprep.subr.bf16.mxu0 0
    %747 = vmatpush1.bf16.msra.mxu0 0
    %748 = vmatprep.subr.bf16.mxu0 0
    %749 = vmatpush1.bf16.msra.mxu0 0
    %750 = vmatprep.subr.bf16.mxu0 0
    %751 = vmatpush1.bf16.msra.mxu0 0
    %752 = vmatprep.subr.bf16.mxu0 0
    %753 = vmatpush1.bf16.msra.mxu0 0
    %754 = vmatprep.subr.bf16.mxu0 0
    %755 = vmatpush1.bf16.msra.mxu0 0
    %756 = vmatprep.subr.bf16.mxu0 0
    %757 = vmatpush1.bf16.msra.mxu0 0
    %758 = vmatprep.mubr.bf16.mxu0 0
    %759 = vmatmul.mubr.bf16.gmra.mrb[0].mxu0 %v654
    %v760 = vpop.f32.mrb[0].mxu0
    %v761 = vadd.f32 %v676, %v760
    %v762 = vpop.f32.mrb[0].mxu0
    %v763 = vpop.f32.mrb[0].mxu0
    %v764 = vadd.f32 %v676, %v763
    %v765 = vpop.f32.mrb[0].mxu0
    %766 = vdwg.mxu0
    %v767 = vmax.f32 %v761, 0.0
    %v768 = vmax.f32 %v764, 0.0
    %v769 = vpack.c.bf16 %v768, %v767
    %v770 = vld [vmem:[%s5] sm:$0xf]
    %v771 = vld [vmem:[%s5 + $0x4] sm:$0xf]
    %v772 = vld [vmem:[%s5 + $0x8] sm:$0xf]
    %v773 = vld [vmem:[%s5 + $0xc] sm:$0xf]
    %v774 = vld [vmem:[%s5 + $0x10] sm:$0xf]
    %v775 = vld [vmem:[%s5 + $0x14] sm:$0xf]
    %v776 = vld [vmem:[%s5 + $0x18] sm:$0xf]
    %v777 = vld [vmem:[%s5 + $0x1c] sm:$0xf]
    %v778 = vld [vmem:[%s6] sm:$0x1]
    %v780 = vlaneseq
    %v781 = vshrl.u32 %v780, 7
    %v782 = vsub.s32 0, %v781
    %v783 = vrot.slane %v778, %v782
    %v793 = vunpack.c.l.b16 %v770
    %v794 = vunpack.c.l.b16 %v771
    %v795 = vunpack.c.l.b16 %v772
    %v796 = vunpack.c.l.b16 %v773
    %v797 = vunpack.c.l.b16 %v774
    %v798 = vunpack.c.l.b16 %v775
    %v799 = vunpack.c.l.b16 %v776
    %v800 = vunpack.c.l.b16 %v777
    %v801 = vpack.c.b16 %v794, %v793
    %v802 = vpack.c.b16 %v796, %v795
    %v803 = vpack.c.b16 %v798, %v797
    %v804 = vpack.c.b16 %v800, %v799
    %vm809 = vcmask 523264
    %v811 = vsel %vm809, %v769, 0
    %813 = vmatprep.subr.bf16.mxu0 0
    %814 = vmatpush1.bf16.msra.mxu0 %v801
    %815 = vmatprep.subr.bf16.mxu0 0
    %816 = vmatpush1.bf16.msra.mxu0 %v802
    %817 = vmatprep.subr.bf16.mxu0 0
    %818 = vmatpush1.bf16.msra.mxu0 %v803
    %819 = vmatprep.subr.bf16.mxu0 0
    %820 = vmatpush1.bf16.msra.mxu0 %v804
    %821 = vmatprep.subr.bf16.mxu0 0
    %822 = vmatpush1.bf16.msra.mxu0 0
    %823 = vmatprep.subr.bf16.mxu0 0
    %824 = vmatpush1.bf16.msra.mxu0 0
    %825 = vmatprep.subr.bf16.mxu0 0
    %826 = vmatpush1.bf16.msra.mxu0 0
    %827 = vmatprep.subr.bf16.mxu0 0
    %828 = vmatpush1.bf16.msra.mxu0 0
    %829 = vmatprep.subr.bf16.mxu0 0
    %830 = vmatpush1.bf16.msra.mxu0 0
    %831 = vmatprep.subr.bf16.mxu0 0
    %832 = vmatpush1.bf16.msra.mxu0 0
    %833 = vmatprep.subr.bf16.mxu0 0
    %834 = vmatpush1.bf16.msra.mxu0 0
    %835 = vmatprep.subr.bf16.mxu0 0
    %836 = vmatpush1.bf16.msra.mxu0 0
    %837 = vmatprep.subr.bf16.mxu0 0
    %838 = vmatpush1.bf16.msra.mxu0 0
    %839 = vmatprep.subr.bf16.mxu0 0
    %840 = vmatpush1.bf16.msra.mxu0 0
    %841 = vmatprep.subr.bf16.mxu0 0
    %842 = vmatpush1.bf16.msra.mxu0 0
    %843 = vmatprep.subr.bf16.mxu0 0
    %844 = vmatpush1.bf16.msra.mxu0 0
    %845 = vmatprep.mubr.bf16.mxu0 0
    %846 = vmatmul.mubr.bf16.gmra.mrb[0].mxu0 %v811
    %v847 = vpop.f32.mrb[0].mxu0
    %v848 = vadd.f32 %v783, %v847
    %v849 = vpop.f32.mrb[0].mxu0
    %v850 = vpop.f32.mrb[0].mxu0
    %v851 = vadd.f32 %v783, %v850
    %v852 = vpop.f32.mrb[0].mxu0
    %853 = vdwg.mxu0
    %854 = vmax.xlane.f32.xlu0 %v848
    %v855 = vpop.xlane.xlu0 %854
    %856 = vmax.xlane.f32.xlu0 %v851
    %v857 = vpop.xlane.xlu0 %856
    %v858 = vsub.f32 %v848, %v855
    %v859 = vsub.f32 %v851, %v857
    %v860 = vmul.f32 %v858, 1.442695
    %v861 = vpow.pop %v860
    %v862 = vmul.f32 %v859, 1.442695
    %v863 = vpow.pop %v862
    %864 = vadd.xlane.f32.xlu0 %v861
    %v865 = vpop.xlane.xlu0 %864
    %866 = vadd.xlane.f32.xlu0 %v863
    %v867 = vpop.xlane.xlu0 %866
    %v868 = vlog2.pop %v865
    %v869 = vmul.f32 %v868, 0.6931472
    %v870 = vlog2.pop %v867
    %v871 = vmul.f32 %v870, 0.6931472
    %v872 = vsub.f32 %v858, %v869
    %v873 = vsub.f32 %v859, %v871
    %874 = vst [vmem:[#allocation5] sm:$0xff] %v872
    %875 = vst [vmem:[#allocation5 + $0x8] sm:$0xff] %v873
    // Predicated region
    $region34: #{tpu_custom_call.1} parent=1 // pred_check
      _
    $region35: #{tpu_custom_call.1} parent=1 // pred_check_branch
      %877 = sbr.rel (0) target = $region37
    $region36: #{tpu_custom_call.1} parent=1 // pred_region
      %s879 = ssub.s32 256, 256
      %880 = vsyncadd [#allocation4], %s879
      %s881 = sshll.u32 [#allocation5], 4
      %s882 = int_to_ptr.vmem [resolvable:$true] %s881
      %887 = dma.vmem_to_hbm [thread:$0]  %s882, 256, %s7, [#allocation4], 128, 128, 8
    $region37: #{tpu_custom_call.1} parent=1 // pred_fallthru
      _
    // Predicated region
    $region38: #{tpu_custom_call.1} parent=1 // pred_check
      _
    $region39: #{tpu_custom_call.1} parent=1 // pred_check_branch
      %889 = sbr.rel (0) target = $region41
    $region40: #{tpu_custom_call.1} parent=1 // pred_region
      %890 = dma.done [#allocation4], 256
    $region41: #{tpu_custom_call.1} parent=1 // pred_fallthru
      _
    %891 = vsyncpa [#allocation3], 1
    %892 = vsyncpa [#allocation4], 1

</llo_original>
